<compile_context>
chip_gen: v5e
topology: v5e:2x2
jax: 0.10.0
libtpu: 0.0.40
codegen_flags: <defaults>
</compile_context>

<pallas_src>
import jax
import jax.numpy as jnp
import numpy as np
from jax.experimental import pallas as pl
from jax.experimental.pallas import tpu as pltpu


def make_fm_kernel(num_continuous, num_discrete, k, discrete_dims):
    C, D = num_continuous, num_discrete
    V = int(sum(discrete_dims))
    offsets = [int(o) for o in np.concatenate([[0], np.cumsum(discrete_dims)[:-1]])]

    def kernel(xc_ref, xd_ref, p_ref, out_ref):
        xc = xc_ref[...]                                    # (B, C)  f32
        xd = xd_ref[...]                                    # (B, D)  i32
        B = xc.shape[0]

        # ---- fused one-hot over ALL discrete features (built once, VPU only) ----
        iota = jax.lax.broadcasted_iota(jnp.int32, (B, V), 1)
        oh = jnp.zeros((B, V), jnp.float32)
        for j in range(D):
            oh = oh + ((xd[:, j:j + 1] + offsets[j]) == iota).astype(jnp.float32)

        # ---- single MXU dot: [oh | xc | xc^2 | 1] @ P ----
        A = jnp.concatenate(
            [oh, xc, xc * xc, jnp.ones((B, 1), jnp.float32)], axis=1)      # (B, V+2C+1)
        G = jnp.dot(A, p_ref[...], preferred_element_type=jnp.float32)     # (B, 1+(D+1)k)

        lin = G[:, 0:1]                                     # linear + bias + emb-sums
                                                            # + cont-disc term - 0.5*p2
        xv = G[:, 1:1 + k]                                  # xc @ v

        # single (B, k) accumulator -> one lane reduction at the end
        combined = 0.5 * (xv * xv)
        for i in range(D):                                  # discrete-discrete pairs (i < j)
            vi = G[:, 1 + (i + 1) * k:1 + (i + 2) * k]
            for j in range(i + 1, D):
                vj = G[:, 1 + (j + 1) * k:1 + (j + 2) * k]
                combined = combined + vi * vj

        out_ref[...] = lin + jnp.sum(combined, axis=1, keepdims=True)

    return kernel


def pack_params(params, num_continuous, num_discrete, k, discrete_dims):
    """Host-side (numpy) one-time packing of all parameters into a single matrix."""
    C, D = num_continuous, num_discrete
    V = int(sum(discrete_dims))
    nrows = V + 2 * C + 1
    ncols = 1 + (D + 1) * k

    v = np.asarray(params["v_continuous"], np.float32)               # (C, k)
    v_sum = v.sum(axis=0)                                            # (k,)

    P = np.zeros((nrows, ncols), np.float32)

    # --- one-hot block (rows 0 .. V) ---
    off = 0
    for j in range(D):
        d = int(discrete_dims[j])
        emb = np.asarray(params["embeddings"][j], np.float32)        # (d, k)
        vd = np.asarray(params["v_discrete"][j], np.float32)         # (d, k)
        # scalar column: sum_k emb + sum_k vd * v_sum  (cont-disc term hoisted)
        P[off:off + d, 0] = emb.sum(axis=1) + (vd * v_sum[None, :]).sum(axis=1)
        # per-feature latent columns (for discrete-discrete pair products)
        P[off:off + d, 1 + (j + 1) * k:1 + (j + 2) * k] = vd
        off += d

    # --- continuous block ---
    w = np.asarray(params["linear_w"], np.float32)                   # (1, C)
    bias = float(np.asarray(params["bias"]).reshape(-1)[0])
    P[V:V + C, 0] = w[0]                                             # xc rows -> linear
    P[V:V + C, 1:1 + k] = v                                          # xc rows -> xv columns
    P[V + C:V + 2 * C, 0] = -0.5 * (v * v).sum(axis=1)               # xc^2 rows -> -0.5*p2
    P[V + 2 * C, 0] = bias                                           # ones row -> bias

    return jnp.asarray(P)


def fm_forward(x_continuous, x_discrete, packed, num_continuous, num_discrete, k,
               discrete_dims):
    B = x_continuous.shape[0]
    kernel = make_fm_kernel(num_continuous, num_discrete, k, discrete_dims)
    vmem = lambda: pl.BlockSpec(memory_space=pltpu.MemorySpace.VMEM)
    return pl.pallas_call(
        kernel,
        out_shape=jax.ShapeDtypeStruct((B, 1), jnp.float32),
        in_specs=[vmem(), vmem(), vmem()],
        out_specs=vmem(),
    )(x_continuous.astype(jnp.float32), x_discrete.astype(jnp.int32), packed)


def fm_reference(x_continuous, x_discrete, params):
    """Pure-JAX reference mirroring the PyTorch forward exactly."""
    linear = x_continuous @ params["linear_w"].T + params["bias"]
    for j in range(x_discrete.shape[1]):
        e = params["embeddings"][j][x_discrete[:, j]]
        linear = linear + jnp.sum(e, axis=1, keepdims=True)
    v = params["v_continuous"]
    p1 = (x_continuous @ v) ** 2
    p2 = (x_continuous ** 2) @ (v ** 2)
    inter = 0.5 * jnp.sum(p1 - p2, axis=1, keepdims=True)
    vd = [params["v_discrete"][j][x_discrete[:, j]] for j in range(x_discrete.shape[1])]
    for i in range(len(vd)):
        for j in range(len(vd)):
            if i < j:
                inter = inter + jnp.sum(vd[i] * vd[j], axis=1, keepdims=True)
    for i in range(v.shape[0]):
        for j in range(len(vd)):
            inter = inter + jnp.sum(v[i] * vd[j], axis=1, keepdims=True)
    return linear + inter


if __name__ == "__main__":
    B, C, D, k = 5, 3, 2, 3
    dims = [10, 15]

    key = jax.random.PRNGKey(0)
    keys = jax.random.split(key, 8)

    x_cont = jax.random.normal(keys[0], (B, C), jnp.float32)
    x_disc = jax.random.randint(keys[1], (B, D), 0, 10).astype(jnp.int32)

    params = {
        "bias": jnp.zeros((1,), jnp.float32),
        "linear_w": jax.random.normal(keys[2], (1, C), jnp.float32) * 0.1,
        "embeddings": [
            jax.random.normal(keys[3], (dims[0], k), jnp.float32),
            jax.random.normal(keys[4], (dims[1], k), jnp.float32),
        ],
        "v_continuous": jax.random.normal(keys[5], (C, k), jnp.float32),
        "v_discrete": [
            jax.random.normal(keys[6], (dims[0], k), jnp.float32),
            jax.random.normal(keys[7], (dims[1], k), jnp.float32),
        ],
    }

    # one-time host-side packing of all 9 parameter tensors into ONE matrix
    packed = pack_params(params, C, D, k, dims)

    out = fm_forward(x_cont, x_disc, packed, C, D, k, dims)
    jax.block_until_ready(out)

    ref = fm_reference(x_cont, x_disc, params)
    assert out.shape == (B, 1) and out.dtype == jnp.float32
    np.testing.assert_allclose(np.asarray(out), np.asarray(ref), rtol=1e-5, atol=1e-5)
    print("KERNEL_OK")
</pallas_src>

<mosaic_0001>
module attributes {stable_mosaic.version = 11 : i64} {
  func.func @kernel(%arg0: memref<5x3xf32, #tpu.memory_space<vmem>>, %arg1: memref<5x2xi32, #tpu.memory_space<vmem>>, %arg2: memref<32x10xf32, #tpu.memory_space<vmem>>, %arg3: memref<5x1xf32, #tpu.memory_space<vmem>>) attributes {dimension_semantics = [], scalar_prefetch = 0 : i64, scratch_operands = 0 : i64, tpu.core_type = #tpu.core_type<tc>} {
    %c0 = arith.constant 0 : index
    %c0_0 = arith.constant 0 : index
    %0 = vector.load %arg0[%c0, %c0_0] : memref<5x3xf32, #tpu.memory_space<vmem>>, vector<5x3xf32>
    %c0_1 = arith.constant 0 : index
    %c0_2 = arith.constant 0 : index
    %1 = vector.load %arg1[%c0_1, %c0_2] : memref<5x2xi32, #tpu.memory_space<vmem>>, vector<5x2xi32>
    %2 = tpu.iota {dimensions = array<i32: 1>} : vector<5x25xi32>
    %cst = arith.constant 0.000000e+00 : f32
    %3 = vector.broadcast %cst : f32 to vector<5x25xf32>
    %4 = vector.extract_strided_slice %1 {offsets = [0, 0], sizes = [5, 1], strides = [1, 1]} : vector<5x2xi32> to vector<5x1xi32>
    %c0_i32 = arith.constant 0 : i32
    %5 = vector.broadcast %c0_i32 : i32 to vector<5x1xi32>
    %6 = arith.addi %4, %5 : vector<5x1xi32>
    %7 = vector.broadcast %6 : vector<5x1xi32> to vector<5x25xi32>
    %8 = arith.cmpi eq, %7, %2 : vector<5x25xi32>
    %9 = arith.extui %8 : vector<5x25xi1> to vector<5x25xi32>
    %10 = arith.sitofp %9 : vector<5x25xi32> to vector<5x25xf32>
    %11 = arith.addf %3, %10 : vector<5x25xf32>
    %12 = vector.extract_strided_slice %1 {offsets = [0, 1], sizes = [5, 1], strides = [1, 1]} : vector<5x2xi32> to vector<5x1xi32>
    %c10_i32 = arith.constant 10 : i32
    %13 = vector.broadcast %c10_i32 : i32 to vector<5x1xi32>
    %14 = arith.addi %12, %13 : vector<5x1xi32>
    %15 = vector.broadcast %14 : vector<5x1xi32> to vector<5x25xi32>
    %16 = arith.cmpi eq, %15, %2 : vector<5x25xi32>
    %17 = arith.extui %16 : vector<5x25xi1> to vector<5x25xi32>
    %18 = arith.sitofp %17 : vector<5x25xi32> to vector<5x25xf32>
    %19 = arith.addf %11, %18 : vector<5x25xf32>
    %20 = arith.mulf %0, %0 : vector<5x3xf32>
    %cst_3 = arith.constant 1.000000e+00 : f32
    %21 = vector.broadcast %cst_3 : f32 to vector<5x1xf32>
    %22 = tpu.concatenate %19, %0, %20, %21 in 1 : vector<5x25xf32>, vector<5x3xf32>, vector<5x3xf32>, vector<5x1xf32> -> vector<5x32xf32>
    %c0_4 = arith.constant 0 : index
    %c0_5 = arith.constant 0 : index
    %23 = vector.load %arg2[%c0_4, %c0_5] : memref<32x10xf32, #tpu.memory_space<vmem>>, vector<32x10xf32>
    %cst_6 = arith.constant dense<0.000000e+00> : vector<5x10xf32>
    %24 = tpu.matmul %22, %23, %cst_6 {dimension_numbers = #tpu.dot_dimension_numbers<[1], [0], [0], [1], [0, 0, 1, 1], [], []>} : vector<5x32xf32>, vector<32x10xf32>, vector<5x10xf32> -> vector<5x10xf32>
    %25 = vector.extract_strided_slice %24 {offsets = [0, 0], sizes = [5, 1], strides = [1, 1]} : vector<5x10xf32> to vector<5x1xf32>
    %26 = vector.extract_strided_slice %24 {offsets = [0, 1], sizes = [5, 3], strides = [1, 1]} : vector<5x10xf32> to vector<5x3xf32>
    %27 = arith.mulf %26, %26 : vector<5x3xf32>
    %cst_7 = arith.constant 5.000000e-01 : f32
    %28 = vector.broadcast %cst_7 : f32 to vector<5x3xf32>
    %29 = arith.mulf %28, %27 : vector<5x3xf32>
    %30 = vector.extract_strided_slice %24 {offsets = [0, 4], sizes = [5, 3], strides = [1, 1]} : vector<5x10xf32> to vector<5x3xf32>
    %31 = vector.extract_strided_slice %24 {offsets = [0, 7], sizes = [5, 3], strides = [1, 1]} : vector<5x10xf32> to vector<5x3xf32>
    %32 = arith.mulf %30, %31 : vector<5x3xf32>
    %33 = arith.addf %29, %32 : vector<5x3xf32>
    %cst_8 = arith.constant dense<0.000000e+00> : vector<5xf32>
    %34 = vector.multi_reduction <add>, %33, %cst_8 [1] : vector<5x3xf32> to vector<5xf32>
    %35 = vector.shape_cast %34 : vector<5xf32> to vector<5x1xf32>
    %36 = arith.addf %25, %35 : vector<5x1xf32>
    %c0_9 = arith.constant 0 : index
    %c0_10 = arith.constant 0 : index
    %37 = vector.load %arg3[%c0_9, %c0_10] : memref<5x1xf32, #tpu.memory_space<vmem>>, vector<5x1xf32>
    tpu.vector_store %arg3[%c0_9, %c0_10], %36 {strides = array<i32>} : memref<5x1xf32, #tpu.memory_space<vmem>>, vector<5x1xf32>,
    return
  }
}

</mosaic_0001>

<llo_original>
// kernel: tpu_custom_call.1
$region0: #{tpu_custom_call.1}
  #allocation0 [shape = 'u32[]', space=smem, size = 0x4, offset = 0x4, fixed_abs, tag = 'smem constant byte address 0x4 - core index']
  #allocation1 [shape = 'u32[72,128]{1,0:T(1,128)}', space=vmem, size = 0x9000, scoped, tag = 'internal scratch']
  %s0 = inlined_call_operand.vmem [shape: f32[5,3], index: 0, kind: input, shape index: {}]
  %s1 = inlined_call_operand.vmem [shape: s32[5,2], index: 1, kind: input, shape index: {}]
  %s2 = inlined_call_operand.vmem [shape: f32[32,10], index: 2, kind: input, shape index: {}]
  %s3 = inlined_call_operand.vmem [shape: f32[5,1], index: 3, kind: output, shape index: {}]
  %s4 = sld [smem:[#allocation0]]
  $region22: #{tpu_custom_call.1} parent=0
    _
  %s6 = ssub.s32 1, %s4
  %s7 = scalar_select 0, %s6, %s4
  // Predicated region
  $region2: #{tpu_custom_call.1} parent=0 // pred_check
    _
  $region3: #{tpu_custom_call.1} parent=0 // pred_check_branch
    %9 = sbr.rel (0) target = $region5
  $region4: #{tpu_custom_call.1} parent=0 // pred_region
    _
  $region5: #{tpu_custom_call.1} parent=0 // pred_fallthru
    _
  // Predicated region
  $region6: #{tpu_custom_call.1} parent=0 // pred_check
    _
  $region7: #{tpu_custom_call.1} parent=0 // pred_check_branch
    %11 = sbr.rel (0) target = $region9
  $region8: #{tpu_custom_call.1} parent=0 // pred_region
    _
  $region9: #{tpu_custom_call.1} parent=0 // pred_fallthru
    _
  // Predicated region
  $region10: #{tpu_custom_call.1} parent=0 // pred_check
    _
  $region11: #{tpu_custom_call.1} parent=0 // pred_check_branch
    %13 = sbr.rel (0) target = $region13
  $region12: #{tpu_custom_call.1} parent=0 // pred_region
    _
  $region13: #{tpu_custom_call.1} parent=0 // pred_fallthru
    _
  %v14 = vld [vmem:[%s0] sm:$0x1f]
  %v15 = vld [vmem:[%s1] sm:$0x1f]
  %v16 = vlaneseq
  %v17 = vand.u32 %v16, 127
  %18 = vset.pattern.permute.xlu0 0
  %19 = vperm.xlu0 %18, %v15
  %v20 = vpop.permute.xlu0 %19
  %vm21 = vcmp.eq.s32.totalorder %v20, %v17
  %v22 = vsel %vm21, 1, 0
  %v23 = vcvt.s32.f32 %v22
  %v24 = vadd.f32 %v23, 0.0
  %v25 = vadd.s32 %v15, 10
  %26 = vset.pattern.permute.xlu0 1
  %27 = vperm.xlu0 %26, %v25
  %v28 = vpop.permute.xlu0 %27
  %vm29 = vcmp.eq.s32.totalorder %v28, %v17
  %v30 = vsel %vm29, 1, 0
  %v31 = vcvt.s32.f32 %v30
  %v32 = vadd.f32 %v24, %v31
  %v33 = vmul.f32 %v14, %v14
  %35 = vrot.lane.b32.xlu0 %v14, 25
  %v36 = vpop.permute.xlu0 %35
  %39 = vrot.lane.b32.xlu0 %v33, 28
  %v40 = vpop.permute.xlu0 %39
  %vm42 = vcmask 203776
  %v43 = vsel %vm42, %v32, %v36
  %vm44 = vcmask 228352
  %v45 = vsel %vm44, %v43, %v40
  %vm46 = vcmask 252928
  %v47 = vsel %vm46, %v45, 1.0
  %v48 = vld [vmem:[%s2] sm:$0xff]
  %v49 = vld [vmem:[%s2 + $0x8] sm:$0xff]
  %v50 = vld [vmem:[%s2 + $0x10] sm:$0xff]
  %v51 = vld [vmem:[%s2 + $0x18] sm:$0xff]
  %vm52 = vcmask 261120
  %v54 = vsel %vm52, %v47, 0
  %56 = vmatpush.msra.mxu0 0.0
  %57 = vmatpush.msra.mxu0 0.0
  %58 = vmatpush.msra.mxu0 0.0
  %59 = vmatpush.msra.mxu0 0.0
  %60 = vmatpush.msra.mxu0 0.0
  %61 = vmatpush.msra.mxu0 0.0
  %62 = vmatpush.msra.mxu0 0.0
  %63 = vmatpush.msra.mxu0 0.0
  %64 = vmatpush.msra.mxu0 0.0
  %65 = vmatpush.msra.mxu0 0.0
  %66 = vmatpush.msra.mxu0 0.0
  %67 = vmatpush.msra.mxu0 0.0
  %68 = vmatpush.msra.mxu0 %v51
  %69 = vmatpush.msra.mxu0 %v50
  %70 = vmatpush.msra.mxu0 %v49
  %71 = vmatpush.msra.mxu0 %v48
  %72 = vmatmul.f32.gmra.mxu0 %v54
  %v73 = vpop.f32.mrf.mxu0
  %v74 = vadd.f32 0.0, %v73
  %75 = vdwg.mxu0
  %v76 = vmul.f32 %v74, %v74
  %v77 = vmul.f32 %v76, 0.5
  %79 = vrot.lane.b32.xlu0 %v74, 125
  %v80 = vpop.permute.xlu0 %79
  %v82 = vmul.f32 %v74, %v80
  %84 = vrot.lane.b32.xlu0 %v82, 125
  %v85 = vpop.permute.xlu0 %84
  %v87 = vadd.f32 %v77, %v85
  %89 = vrot.lane.b32.xlu0 %v87, 127
  %v90 = vpop.permute.xlu0 %89
  %vm92 = vcmask 20480
  %v93 = vsel %vm92, %v90, 0.0
  %94 = vadd.xlane.f32.xlu0 %v93
  %v95 = vpop.xlane.xlu0 %94
  %v96 = vadd.f32 %v74, %v95
  %vm97 = vcmask 4096
  %98 = vst.msk [vmem:[%s3] sm:$0x1f] %vm97, %v96
  // Predicated region
  $region14: #{tpu_custom_call.1} parent=0 // pred_check
    _
  $region15: #{tpu_custom_call.1} parent=0 // pred_check_branch
    %100 = sbr.rel (0) target = $region17
  $region16: #{tpu_custom_call.1} parent=0 // pred_region
    _
  $region17: #{tpu_custom_call.1} parent=0 // pred_fallthru
    _
  // Predicated region
  $region18: #{tpu_custom_call.1} parent=0 // pred_check
    _
  $region19: #{tpu_custom_call.1} parent=0 // pred_check_branch
    %102 = sbr.rel (0) target = $region21
  $region20: #{tpu_custom_call.1} parent=0 // pred_region
    _
  $region21: #{tpu_custom_call.1} parent=0 // pred_fallthru
    _

</llo_original>
